<compile_context>
chip_gen: v7x
topology: tpu7x:2x2x1
jax: 0.10.0
libtpu: 0.0.40
codegen_flags: <defaults>
</compile_context>

<pallas_src>
import functools
import math

import jax
import jax.numpy as jnp
from jax import lax
from jax.experimental import pallas as pl
from jax.experimental.pallas import tpu as pltpu


def _merge_logdets_kernel(x_ref, wsq_ref, wlin_ref, bias_ref, out_ref, acc_ref,
                          *, log_n_components):
    # grid = (batch blocks [parallel], D blocks [arbitrary / reduction])
    # x_ref:    [TN, TK]  streamed input tile (native dtype)
    # wsq_ref:  [C, TK]   -0.5 * exp(-2*log_std)
    # wlin_ref: [C, TK]   mu * exp(-2*log_std)
    # bias_ref: [C, 1]    0.5*sum(mu^2*inv_var) + sum(log_std) + 0.5*D*log(2pi)
    # out_ref:  [1, TN]   merged log-dets (lane-dense)
    # acc_ref:  [C, TN]   f32 VMEM accumulator across the D axis
    k = pl.program_id(1)

    @pl.when(k == 0)
    def _init():
        acc_ref[...] = jnp.zeros_like(acc_ref)

    x = x_ref[...].astype(jnp.float32)           # upcast in-kernel (cheap, hidden under DMA)
    dn = (((1,), (1,)), ((), ()))                 # contract the last (lane-dense) dim of both
    acc_ref[...] += (
        lax.dot_general(wsq_ref[...], x * x, dn, preferred_element_type=jnp.float32)
        + lax.dot_general(wlin_ref[...], x, dn, preferred_element_type=jnp.float32)
    )

    @pl.when(k == pl.num_programs(1) - 1)
    def _finalize():
        lp = acc_ref[...] - bias_ref[...]         # [C, TN] per-component log-dets
        m = jnp.max(lp, axis=0, keepdims=True)    # [1, TN]
        s = jnp.sum(jnp.exp(lp - m), axis=0, keepdims=True)
        out_ref[...] = m + jnp.log(s) - log_n_components


def _round_up(x, m):
    return ((x + m - 1) // m) * m


def _cdiv(a, b):
    return -(-a // b)


def _choose_tk(d, tn, budget_bytes, x_itemsize):
    """Largest legal D-chunk that keeps the per-step VMEM footprint under budget.

    Per step: ~ TN*TK*(2*x_bytes) for the double-buffered x tiles plus
    ~ TN*TK*8 for the in-kernel f32 upcast + x*x temporaries (params/acc are tiny).
    TK must be the full D or a multiple-of-128 exact divisor of D (ragged blocks
    on the reduction axis are not safe with an accumulator).
    """
    per_col = tn * (2 * x_itemsize + 8)
    tk_max = max(128, budget_bytes // per_col)
    if d <= tk_max:
        return d
    t = (tk_max // 128) * 128
    while t >= 128:
        if d % t == 0:
            return t
        t -= 128
    # TODO(synk): no multiple-of-128 divisor of D fits the budget; fall back to a
    # single full-D block (may exceed the VMEM budget for pathological D).
    return d


def merge_logdets_forward(x_nchw, means, log_stds, *, tn=512,
                          vmem_budget_bytes=40 * 1024 * 1024):
    """Equivalent of MergeLogDets.forward(x, fixed={'y': None}): returns (y, logdets)."""
    n = x_nchw.shape[0]
    d = math.prod(x_nchw.shape[1:])              # static python int
    c = means.shape[0]
    x_flat = x_nchw.reshape(n, d)                # native dtype: no upcast, no pad copy

    # ---- hoisted parameter-only precompute (tiny, runs once outside the hot loop) ----
    #   lp[c, n] = sum_d( wsq[c,d]*x[n,d]^2 + wlin[c,d]*x[n,d] ) - bias[c]
    mu = means.astype(jnp.float32)
    ls = log_stds.astype(jnp.float32)
    inv_var = jnp.exp(-2.0 * ls)                                  # [C, D]
    wsq = (-0.5) * inv_var                                        # [C, D]
    wlin = mu * inv_var                                           # [C, D]
    bias = (0.5 * jnp.sum(mu * mu * inv_var, axis=-1)
            + jnp.sum(ls, axis=-1)
            + 0.5 * d * math.log(2.0 * math.pi))[:, None]         # [C, 1]

    # ---- batch tile TN ----
    if n <= 128:
        # Full-batch single block: full-extent block dims need no 8/128 alignment,
        # so tiny batches don't stream padded rows.
        tn = n
    else:
        tn = min(tn, _round_up(n, 128))
        half = _round_up(_cdiv(n, 2), 128)
        if half >= 256:
            tn = min(tn, half)   # guarantee >= 2 batch blocks -> megacore engages (v7x)

    # ---- D tile TK (VMEM-budgeted, exact divisor of D) ----
    tk = _choose_tk(d, tn, vmem_budget_bytes, x_flat.dtype.itemsize)

    grid = (_cdiv(n, tn), _cdiv(d, tk))

    kernel = functools.partial(_merge_logdets_kernel, log_n_components=math.log(c))

    out = pl.pallas_call(
        kernel,
        out_shape=jax.ShapeDtypeStruct((1, n), jnp.float32),
        grid_spec=pltpu.PrefetchScalarGridSpec(
            num_scalar_prefetch=0,
            grid=grid,
            in_specs=[
                pl.BlockSpec((tn, tk), lambda i, k: (i, k)),   # streamed x tile
                pl.BlockSpec((c, tk), lambda i, k: (0, k)),    # small param tiles
                pl.BlockSpec((c, tk), lambda i, k: (0, k)),
                pl.BlockSpec((c, 1), lambda i, k: (0, 0)),
            ],
            out_specs=pl.BlockSpec((1, tn), lambda i, k: (0, i)),   # lane-dense output
            scratch_shapes=[pltpu.VMEM((c, tn), jnp.float32)],      # [C, TN] accumulator
        ),
        compiler_params=pltpu.CompilerParams(
            dimension_semantics=("parallel", "arbitrary"),
            vmem_limit_bytes=48 * 1024 * 1024,   # > v5e/v6e scoped defaults, < v7x 64 MiB physical
        ),
    )(x_flat, wsq, wlin, bias)

    logdets = out[0, :n]
    # TODO(synk): labeled branch (fixed['y'] is not None -> unmerged per-component
    # logdets) and MergeLogDets.invert (sampling) are not part of this merged
    # forward path and are left unimplemented.
    return x_nchw, logdets


def _reference(x_nchw, means, log_stds):
    n = x_nchw.shape[0]
    x = x_nchw.reshape(n, -1).astype(jnp.float32)
    d = x.shape[1]
    c = means.shape[0]
    diff = x[:, None, :] - means[None, :, :].astype(jnp.float32)
    z = diff / jnp.exp(log_stds)[None, :, :].astype(jnp.float32)
    lp = (
        -0.5 * jnp.sum(z * z, axis=-1)
        - jnp.sum(log_stds, axis=-1)[None, :]
        - 0.5 * d * math.log(2.0 * math.pi)
    )
    return jax.scipy.special.logsumexp(lp, axis=-1) - math.log(c)


if __name__ == "__main__":
    key = jax.random.PRNGKey(0)
    k_x, k_mu, k_ls = jax.random.split(key, 3)

    # Small shapes consistent with the module's usage: NCHW image-like input.
    N, C_IMG, H, W = 2, 4, 16, 16
    D = C_IMG * H * W                   # 1024, lane-aligned
    N_COMPONENTS = 4

    x = jax.random.normal(k_x, (N, C_IMG, H, W), dtype=jnp.float32)
    means = 0.1 * jax.random.normal(k_mu, (N_COMPONENTS, D), dtype=jnp.float32)
    log_stds = 0.05 * jax.random.normal(k_ls, (N_COMPONENTS, D), dtype=jnp.float32)

    y_out, logdets = merge_logdets_forward(x, means, log_stds)
    jax.block_until_ready((y_out, logdets))

    ref = _reference(x, means, log_stds)
    assert y_out.shape == x.shape and jnp.allclose(y_out, x)
    assert logdets.shape == (N,)
    assert jnp.allclose(logdets, ref, rtol=1e-4, atol=1e-2), (logdets, ref)

    print("KERNEL_OK")
</pallas_src>

<mosaic_0001>
module attributes {stable_mosaic.version = 11 : i64} {
  func.func @_merge_logdets_kernel(%arg0: i32, %arg1: i32, %arg2: memref<2x1024xf32, #tpu.memory_space<vmem>>, %arg3: memref<4x1024xf32, #tpu.memory_space<vmem>>, %arg4: memref<4x1024xf32, #tpu.memory_space<vmem>>, %arg5: memref<4x1xf32, #tpu.memory_space<vmem>>, %arg6: memref<1x2xf32, #tpu.memory_space<vmem>>, %arg7: memref<4x2xf32, #tpu.memory_space<vmem>>) attributes {dimension_semantics = [#tpu.dimension_semantics<parallel>, #tpu.dimension_semantics<arbitrary>], iteration_bounds = array<i64: 1, 1>, scalar_prefetch = 0 : i64, scratch_operands = 1 : i64, tpu.core_type = #tpu.core_type<tc>, window_params = [{transform_indices = @transform_0, window_bounds = array<i64: 2, 1024>}, {transform_indices = @transform_1, window_bounds = array<i64: 4, 1024>}, {transform_indices = @transform_2, window_bounds = array<i64: 4, 1024>}, {pipeline_mode = #tpu.pipeline_mode<synchronous>, transform_indices = @transform_3, window_bounds = array<i64: 4, 1>}, {transform_indices = @transform_4, window_bounds = array<i64: 1, 2>}]} {
    %c0_i32 = arith.constant 0 : i32
    %0 = arith.cmpi eq, %arg1, %c0_i32 : i32
    %1 = arith.extui %0 : i1 to i32
    %c0_i32_0 = arith.constant 0 : i32
    %2 = arith.cmpi ne, %1, %c0_i32_0 : i32
    scf.if %2 {
      %cst_13 = arith.constant 0.000000e+00 : f32
      %16 = vector.broadcast %cst_13 : f32 to vector<4x2xf32>
      %c0_14 = arith.constant 0 : index
      %c0_15 = arith.constant 0 : index
      %17 = vector.load %arg7[%c0_14, %c0_15] : memref<4x2xf32, #tpu.memory_space<vmem>>, vector<4x2xf32>
      tpu.vector_store %arg7[%c0_14, %c0_15], %16 {strides = array<i32>} : memref<4x2xf32, #tpu.memory_space<vmem>>, vector<4x2xf32>,
    } else {
    }
    %c0 = arith.constant 0 : index
    %c0_1 = arith.constant 0 : index
    %3 = vector.load %arg2[%c0, %c0_1] : memref<2x1024xf32, #tpu.memory_space<vmem>>, vector<2x1024xf32>
    %c0_2 = arith.constant 0 : index
    %c0_3 = arith.constant 0 : index
    %4 = vector.load %arg7[%c0_2, %c0_3] : memref<4x2xf32, #tpu.memory_space<vmem>>, vector<4x2xf32>
    %c0_4 = arith.constant 0 : index
    %c0_5 = arith.constant 0 : index
    %5 = vector.load %arg3[%c0_4, %c0_5] : memref<4x1024xf32, #tpu.memory_space<vmem>>, vector<4x1024xf32>
    %6 = arith.mulf %3, %3 : vector<2x1024xf32>
    %cst = arith.constant dense<0.000000e+00> : vector<4x2xf32>
    %7 = tpu.matmul %5, %6, %cst {dimension_numbers = #tpu.dot_dimension_numbers<[1], [1], [0], [0], [0, 0, 1, 0], [], []>} : vector<4x1024xf32>, vector<2x1024xf32>, vector<4x2xf32> -> vector<4x2xf32>
    %c0_6 = arith.constant 0 : index
    %c0_7 = arith.constant 0 : index
    %8 = vector.load %arg4[%c0_6, %c0_7] : memref<4x1024xf32, #tpu.memory_space<vmem>>, vector<4x1024xf32>
    %cst_8 = arith.constant dense<0.000000e+00> : vector<4x2xf32>
    %9 = tpu.matmul %8, %3, %cst_8 {dimension_numbers = #tpu.dot_dimension_numbers<[1], [1], [0], [0], [0, 0, 1, 0], [], []>} : vector<4x1024xf32>, vector<2x1024xf32>, vector<4x2xf32> -> vector<4x2xf32>
    %10 = arith.addf %7, %9 : vector<4x2xf32>
    %11 = arith.addf %4, %10 : vector<4x2xf32>
    %c0_9 = arith.constant 0 : index
    %c0_10 = arith.constant 0 : index
    %12 = vector.load %arg7[%c0_9, %c0_10] : memref<4x2xf32, #tpu.memory_space<vmem>>, vector<4x2xf32>
    tpu.vector_store %arg7[%c0_9, %c0_10], %11 {strides = array<i32>} : memref<4x2xf32, #tpu.memory_space<vmem>>, vector<4x2xf32>,
    %c0_i32_11 = arith.constant 0 : i32
    %13 = arith.cmpi eq, %arg1, %c0_i32_11 : i32
    %14 = arith.extui %13 : i1 to i32
    %c0_i32_12 = arith.constant 0 : i32
    %15 = arith.cmpi ne, %14, %c0_i32_12 : i32
    scf.if %15 {
      %c0_13 = arith.constant 0 : index
      %c0_14 = arith.constant 0 : index
      %16 = vector.load %arg7[%c0_13, %c0_14] : memref<4x2xf32, #tpu.memory_space<vmem>>, vector<4x2xf32>
      %c0_15 = arith.constant 0 : index
      %c0_16 = arith.constant 0 : index
      %17 = vector.load %arg5[%c0_15, %c0_16] : memref<4x1xf32, #tpu.memory_space<vmem>>, vector<4x1xf32>
      %18 = vector.broadcast %17 : vector<4x1xf32> to vector<4x2xf32>
      %19 = arith.subf %16, %18 : vector<4x2xf32>
      %cst_17 = arith.constant dense<0xFF800000> : vector<2xf32>
      %20 = vector.multi_reduction <maximumf>, %19, %cst_17 [0] : vector<4x2xf32> to vector<2xf32>
      %21 = vector.shape_cast %20 : vector<2xf32> to vector<1x2xf32>
      %22 = vector.broadcast %21 : vector<1x2xf32> to vector<4x2xf32>
      %23 = arith.subf %19, %22 : vector<4x2xf32>
      %24 = math.exp %23 : vector<4x2xf32>
      %cst_18 = arith.constant dense<0.000000e+00> : vector<2xf32>
      %25 = vector.multi_reduction <add>, %24, %cst_18 [0] : vector<4x2xf32> to vector<2xf32>
      %26 = vector.shape_cast %25 : vector<2xf32> to vector<1x2xf32>
      %27 = math.log %26 : vector<1x2xf32>
      %28 = arith.addf %21, %27 : vector<1x2xf32>
      %cst_19 = arith.constant 1.38629436 : f32
      %29 = vector.broadcast %cst_19 : f32 to vector<1x2xf32>
      %30 = arith.subf %28, %29 : vector<1x2xf32>
      %c0_20 = arith.constant 0 : index
      %c0_21 = arith.constant 0 : index
      %31 = vector.load %arg6[%c0_20, %c0_21] : memref<1x2xf32, #tpu.memory_space<vmem>>, vector<1x2xf32>
      tpu.vector_store %arg6[%c0_20, %c0_21], %30 {strides = array<i32>} : memref<1x2xf32, #tpu.memory_space<vmem>>, vector<1x2xf32>,
    } else {
    }
    return
  }
  func.func @transform_0(%arg0: i32, %arg1: i32) -> (i32, i32) {
    %c0_i32 = arith.constant 0 : i32
    return %arg0, %arg1 : i32, i32
  }
  func.func @transform_1(%arg0: i32, %arg1: i32) -> (i32, i32) {
    %c0_i32 = arith.constant 0 : i32
    %c0_i32_0 = arith.constant 0 : i32
    return %c0_i32, %arg1 : i32, i32
  }
  func.func @transform_2(%arg0: i32, %arg1: i32) -> (i32, i32) {
    %c0_i32 = arith.constant 0 : i32
    %c0_i32_0 = arith.constant 0 : i32
    return %c0_i32, %arg1 : i32, i32
  }
  func.func @transform_3(%arg0: i32, %arg1: i32) -> (i32, i32) {
    %c0_i32 = arith.constant 0 : i32
    %c0_i32_0 = arith.constant 0 : i32
    %c0_i32_1 = arith.constant 0 : i32
    return %c0_i32, %c0_i32_0 : i32, i32
  }
  func.func @transform_4(%arg0: i32, %arg1: i32) -> (i32, i32) {
    %c0_i32 = arith.constant 0 : i32
    %c0_i32_0 = arith.constant 0 : i32
    return %c0_i32, %arg0 : i32, i32
  }
}

</mosaic_0001>

<llo_original>
// kernel: tpu_custom_call.1
$region0: #{tpu_custom_call.1}
  #allocation0 [shape = 'u32[]', space=smem, size = 0x4, offset = 0x4, fixed_abs, tag = 'smem constant byte address 0x4 - core index']
  #allocation1 [shape = 'u32[144,128]{1,0:T(1,128)}', space=vmem, size = 0x12000, scoped, tag = 'internal scratch']
  #allocation2 [shape = 'f32[4,2]{1,0:T(4,128)}', space=vmem, size = 0x800, scoped, tag = 'scratch operand']
  %s0 = inlined_call_operand.hbm [shape: f32[2,1024], index: 0, kind: input, shape index: {}]
  %s1 = inlined_call_operand.hbm [shape: f32[4,1024], index: 1, kind: input, shape index: {}]
  %s2 = inlined_call_operand.hbm [shape: f32[4,1024], index: 2, kind: input, shape index: {}]
  %s3 = inlined_call_operand.vmem [shape: f32[4,1], index: 3, kind: input, shape index: {}]
  %s4 = inlined_call_operand.hbm [shape: f32[1,2], index: 4, kind: output, shape index: {}]
  %s5 = sld [smem:[#allocation0]]
  $region46: #{tpu_custom_call.1} parent=0
    _
  %s7 = ssub.s32 1, %s5
  %s8 = scalar_select 0, %s7, %s5
  $region1: #{tpu_custom_call.1} parent=0
    #allocation3 [shape = 'u8[8192]{0}', space=vmem, size = 0x2000, scoped, tag = 'input window, operand 0, single buffered']
    #allocation4 [shape = 's32[1]{0}', space=sflag, size = 0x4, scoped, tag = 'scoped memory for tpu_custom_call.1']
    #allocation5 [shape = 's32[1]{0}', space=sflag, size = 0x4, scoped, tag = 'scoped memory for tpu_custom_call.1']
    #allocation6 [shape = 'u8[16384]{0}', space=vmem, size = 0x4000, scoped, tag = 'input window, operand 1, single buffered']
    #allocation7 [shape = 's32[1]{0}', space=sflag, size = 0x4, scoped, tag = 'scoped memory for tpu_custom_call.1']
    #allocation8 [shape = 'u8[16384]{0}', space=vmem, size = 0x4000, scoped, tag = 'input window, operand 2, single buffered']
    #allocation9 [shape = 'u8[512]{0}', space=vmem, size = 0x400, scoped, tag = 'output window, operand 0, single buffered']
    %9 = vsyncpa [#allocation4], 0
    %10 = vsyncpa [#allocation7], 0
    %11 = vsyncpa [#allocation5], 0
    // Predicated region
    $region2: #{tpu_custom_call.1} parent=1 // pred_check
      _
    $region3: #{tpu_custom_call.1} parent=1 // pred_check_branch
      %13 = sbr.rel (0) target = $region5
    $region4: #{tpu_custom_call.1} parent=1 // pred_region
      %s15 = ssub.s32 256, 256
      %16 = vsyncadd [#allocation4], %s15
      %s18 = sshll.u32 [#allocation3], 4
      %s19 = int_to_ptr.vmem [resolvable:$true] %s18
      %21 = dma.hbm_to_vmem [thread:$0]  %s0, 256, %s19, [#allocation4]
    $region5: #{tpu_custom_call.1} parent=1 // pred_fallthru
      _
    // Predicated region
    $region6: #{tpu_custom_call.1} parent=1 // pred_check
      _
    $region7: #{tpu_custom_call.1} parent=1 // pred_check_branch
      %23 = sbr.rel (0) target = $region9
    $region8: #{tpu_custom_call.1} parent=1 // pred_region
      %s25 = ssub.s32 512, 512
      %26 = vsyncadd [#allocation7], %s25
      %s28 = sshll.u32 [#allocation6], 4
      %s29 = int_to_ptr.vmem [resolvable:$true] %s28
      %31 = dma.hbm_to_vmem [thread:$0]  %s1, 512, %s29, [#allocation7]
    $region9: #{tpu_custom_call.1} parent=1 // pred_fallthru
      _
    // Predicated region
    $region10: #{tpu_custom_call.1} parent=1 // pred_check
      _
    $region11: #{tpu_custom_call.1} parent=1 // pred_check_branch
      %33 = sbr.rel (0) target = $region13
    $region12: #{tpu_custom_call.1} parent=1 // pred_region
      %s35 = ssub.s32 512, 512
      %36 = vsyncadd [#allocation7], %s35
      %s38 = sshll.u32 [#allocation8], 4
      %s39 = int_to_ptr.vmem [resolvable:$true] %s38
      %41 = dma.hbm_to_vmem [thread:$0]  %s2, 512, %s39, [#allocation7]
    $region13: #{tpu_custom_call.1} parent=1 // pred_fallthru
      _
    // Predicated region
    $region14: #{tpu_custom_call.1} parent=1 // pred_check
      _
    $region15: #{tpu_custom_call.1} parent=1 // pred_check_branch
      %43 = sbr.rel (0) target = $region17
    $region16: #{tpu_custom_call.1} parent=1 // pred_region
      _
    $region17: #{tpu_custom_call.1} parent=1 // pred_fallthru
      _
    // Predicated region
    $region18: #{tpu_custom_call.1} parent=1 // pred_check
      _
    $region19: #{tpu_custom_call.1} parent=1 // pred_check_branch
      %45 = sbr.rel (0) target = $region21
    $region20: #{tpu_custom_call.1} parent=1 // pred_region
      %46 = dma.done [#allocation4], 256
    $region21: #{tpu_custom_call.1} parent=1 // pred_fallthru
      _
    // Predicated region
    $region22: #{tpu_custom_call.1} parent=1 // pred_check
      _
    $region23: #{tpu_custom_call.1} parent=1 // pred_check_branch
      %48 = sbr.rel (0) target = $region25
    $region24: #{tpu_custom_call.1} parent=1 // pred_region
      %49 = dma.done [#allocation7], 512
    $region25: #{tpu_custom_call.1} parent=1 // pred_fallthru
      _
    // Predicated region
    $region26: #{tpu_custom_call.1} parent=1 // pred_check
      _
    $region27: #{tpu_custom_call.1} parent=1 // pred_check_branch
      %51 = sbr.rel (0) target = $region29
    $region28: #{tpu_custom_call.1} parent=1 // pred_region
      %52 = dma.done [#allocation7], 512
    $region29: #{tpu_custom_call.1} parent=1 // pred_fallthru
      _
    %p53 = scmp.eq.s32.totalorder 0, 0
    // Predicated region
    $region30: #{tpu_custom_call.1} parent=1 // pred_check
      %p54 = pneg %p53
    $region31: #{tpu_custom_call.1} parent=1 // pred_check_branch
      %56 = sbr.rel (%p54) target = $region33
    $region32: #{tpu_custom_call.1} parent=1 // pred_region
      %vm57 = vcmask 11264
      %58 = vst.msk [vmem:[#allocation2] sm:$0xf] %vm57, 0.0
    $region33: #{tpu_custom_call.1} parent=1 // pred_fallthru
      _
    %v59 = vld [vmem:[#allocation3] sm:$0xff]
    %v60 = vld [vmem:[#allocation3 + $0x8] sm:$0xff]
    %v61 = vld [vmem:[#allocation2] sm:$0xf]
    %v62 = vld [vmem:[#allocation6] sm:$0xff]
    %v63 = vld [vmem:[#allocation6 + $0x8] sm:$0xff]
    %v64 = vld [vmem:[#allocation6 + $0x10] sm:$0xff]
    %v65 = vld [vmem:[#allocation6 + $0x18] sm:$0xff]
    %v66 = vmul.f32 %v59, %v59
    %v67 = vmul.f32 %v60, %v60
    %v68 = vld [vmem:[#allocation8] sm:$0xff]
    %v69 = vld [vmem:[#allocation8 + $0x8] sm:$0xff]
    %v70 = vld [vmem:[#allocation8 + $0x10] sm:$0xff]
    %v71 = vld [vmem:[#allocation8 + $0x18] sm:$0xff]
    %v76 = vcombine.high %v68, %v68
    %v77 = vcombine.high %v69, %v69
    %v78 = vcombine.high %v70, %v70
    %v79 = vcombine.high %v71, %v71
    %v86 = vcombine.high %v59, %v59
    %v88 = vunpack.c.l.s4 1983009808
    %v89 = vunpack.c.0.s8 %v88
    %v90 = vlaneseq
    %v91 = vshrl.u32 %v90, 7
    %v92 = vsub.s32 %v89, %v91
    %v93 = vrot.slane %v59, %v92
    %v95 = vunpack.c.l.s4 1983009808
    %v96 = vunpack.c.0.s8 %v95
    %v97 = vlaneseq
    %v98 = vshrl.u32 %v97, 7
    %v99 = vsub.s32 %v96, %v98
    %v100 = vrot.slane %v86, %v99
    %v101 = vcombine.high %v93, %v93
    %v102 = vcombine.high %v100, %v100
    %v103 = vcombine.high %v60, %v60
    %v105 = vunpack.c.l.s4 1983009808
    %v106 = vunpack.c.0.s8 %v105
    %v107 = vlaneseq
    %v108 = vshrl.u32 %v107, 7
    %v109 = vsub.s32 %v106, %v108
    %v110 = vrot.slane %v60, %v109
    %v112 = vunpack.c.l.s4 1983009808
    %v113 = vunpack.c.0.s8 %v112
    %v114 = vlaneseq
    %v115 = vshrl.u32 %v114, 7
    %v116 = vsub.s32 %v113, %v115
    %v117 = vrot.slane %v103, %v116
    %v118 = vcombine.high %v110, %v110
    %v119 = vcombine.high %v117, %v117
    %128 = vmatprep.subr.mxu0 %v101
    %129 = vmatpush1.xpose.msra.mxu0 %v93
    %130 = vmatprep.subr.mxu0 0.0
    %131 = vmatpush1.xpose.msra.mxu0 0.0
    %132 = vmatprep.subr.mxu0 0.0
    %133 = vmatpush1.xpose.msra.mxu0 0.0
    %134 = vmatprep.subr.mxu0 0.0
    %135 = vmatpush1.xpose.msra.mxu0 0.0
    %136 = vmatprep.subr.mxu0 0.0
    %137 = vmatpush1.xpose.msra.mxu0 0.0
    %138 = vmatprep.subr.mxu0 0.0
    %139 = vmatpush1.xpose.msra.mxu0 0.0
    %140 = vmatprep.subr.mxu0 0.0
    %141 = vmatpush1.xpose.msra.mxu0 0.0
    %142 = vmatprep.subr.mxu0 0.0
    %143 = vmatpush1.xpose.msra.mxu0 0.0
    %144 = vmatprep.subr.mxu0 0.0
    %145 = vmatpush1.xpose.msra.mxu0 0.0
    %146 = vmatprep.subr.mxu0 0.0
    %147 = vmatpush1.xpose.msra.mxu0 0.0
    %148 = vmatprep.subr.mxu0 0.0
    %149 = vmatpush1.xpose.msra.mxu0 0.0
    %150 = vmatprep.subr.mxu0 0.0
    %151 = vmatpush1.xpose.msra.mxu0 0.0
    %152 = vmatprep.subr.mxu0 0.0
    %153 = vmatpush1.xpose.msra.mxu0 0.0
    %154 = vmatprep.subr.mxu0 0.0
    %155 = vmatpush1.xpose.msra.mxu0 0.0
    %156 = vmatprep.subr.mxu0 0.0
    %157 = vmatpush1.xpose.msra.mxu0 0.0
    %158 = vmatprep.subr.mxu0 0.0
    %159 = vmatpush1.xpose.msra.mxu0 0.0
    %160 = vmatprep.subr.mxu0 0.0
    %161 = vmatpush1.xpose.msra.mxu0 0.0
    %162 = vmatprep.subr.mxu0 0.0
    %163 = vmatpush1.xpose.msra.mxu0 0.0
    %164 = vmatprep.subr.mxu0 0.0
    %165 = vmatpush1.xpose.msra.mxu0 0.0
    %166 = vmatprep.subr.mxu0 0.0
    %167 = vmatpush1.xpose.msra.mxu0 0.0
    %168 = vmatprep.subr.mxu0 0.0
    %169 = vmatpush1.xpose.msra.mxu0 0.0
    %170 = vmatprep.subr.mxu0 0.0
    %171 = vmatpush1.xpose.msra.mxu0 0.0
    %172 = vmatprep.subr.mxu0 0.0
    %173 = vmatpush1.xpose.msra.mxu0 0.0
    %174 = vmatprep.subr.mxu0 0.0
    %175 = vmatpush1.xpose.msra.mxu0 0.0
    %176 = vmatprep.subr.mxu0 0.0
    %177 = vmatpush1.xpose.msra.mxu0 0.0
    %178 = vmatprep.subr.mxu0 0.0
    %179 = vmatpush1.xpose.msra.mxu0 0.0
    %180 = vmatprep.subr.mxu0 0.0
    %181 = vmatpush1.xpose.msra.mxu0 0.0
    %182 = vmatprep.subr.mxu0 0.0
    %183 = vmatpush1.xpose.msra.mxu0 0.0
    %184 = vmatprep.subr.mxu0 0.0
    %185 = vmatpush1.xpose.msra.mxu0 0.0
    %186 = vmatprep.subr.mxu0 0.0
    %187 = vmatpush1.xpose.msra.mxu0 0.0
    %188 = vmatprep.subr.mxu0 0.0
    %189 = vmatpush1.xpose.msra.mxu0 0.0
    %190 = vmatprep.subr.mxu0 0.0
    %191 = vmatpush1.xpose.msra.mxu0 0.0
    %192 = vmatprep.mubr.f32.mxu0 %v76
    %193 = vmatmul.mubr.f32.gmra.mrb[0].mxu0 %v68
    %v194 = vpop.f32.mrb[0].mxu0
    %v195 = vadd.f32 0.0, %v194
    %v196 = vpop.f32.mrb[0].mxu0
    %197 = vdwg.mxu0
    %198 = vmatprep.subr.mxu0 %v102
    %199 = vmatpush1.xpose.msra.mxu0 %v100
    %200 = vmatprep.subr.mxu0 0.0
    %201 = vmatpush1.xpose.msra.mxu0 0.0
    %202 = vmatprep.subr.mxu0 0.0
    %203 = vmatpush1.xpose.msra.mxu0 0.0
    %204 = vmatprep.subr.mxu0 0.0
    %205 = vmatpush1.xpose.msra.mxu0 0.0
    %206 = vmatprep.subr.mxu0 0.0
    %207 = vmatpush1.xpose.msra.mxu0 0.0
    %208 = vmatprep.subr.mxu0 0.0
    %209 = vmatpush1.xpose.msra.mxu0 0.0
    %210 = vmatprep.subr.mxu0 0.0
    %211 = vmatpush1.xpose.msra.mxu0 0.0
    %212 = vmatprep.subr.mxu0 0.0
    %213 = vmatpush1.xpose.msra.mxu0 0.0
    %214 = vmatprep.subr.mxu0 0.0
    %215 = vmatpush1.xpose.msra.mxu0 0.0
    %216 = vmatprep.subr.mxu0 0.0
    %217 = vmatpush1.xpose.msra.mxu0 0.0
    %218 = vmatprep.subr.mxu0 0.0
    %219 = vmatpush1.xpose.msra.mxu0 0.0
    %220 = vmatprep.subr.mxu0 0.0
    %221 = vmatpush1.xpose.msra.mxu0 0.0
    %222 = vmatprep.subr.mxu0 0.0
    %223 = vmatpush1.xpose.msra.mxu0 0.0
    %224 = vmatprep.subr.mxu0 0.0
    %225 = vmatpush1.xpose.msra.mxu0 0.0
    %226 = vmatprep.subr.mxu0 0.0
    %227 = vmatpush1.xpose.msra.mxu0 0.0
    %228 = vmatprep.subr.mxu0 0.0
    %229 = vmatpush1.xpose.msra.mxu0 0.0
    %230 = vmatprep.subr.mxu0 0.0
    %231 = vmatpush1.xpose.msra.mxu0 0.0
    %232 = vmatprep.subr.mxu0 0.0
    %233 = vmatpush1.xpose.msra.mxu0 0.0
    %234 = vmatprep.subr.mxu0 0.0
    %235 = vmatpush1.xpose.msra.mxu0 0.0
    %236 = vmatprep.subr.mxu0 0.0
    %237 = vmatpush1.xpose.msra.mxu0 0.0
    %238 = vmatprep.subr.mxu0 0.0
    %239 = vmatpush1.xpose.msra.mxu0 0.0
    %240 = vmatprep.subr.mxu0 0.0
    %241 = vmatpush1.xpose.msra.mxu0 0.0
    %242 = vmatprep.subr.mxu0 0.0
    %243 = vmatpush1.xpose.msra.mxu0 0.0
    %244 = vmatprep.subr.mxu0 0.0
    %245 = vmatpush1.xpose.msra.mxu0 0.0
    %246 = vmatprep.subr.mxu0 0.0
    %247 = vmatpush1.xpose.msra.mxu0 0.0
    %248 = vmatprep.subr.mxu0 0.0
    %249 = vmatpush1.xpose.msra.mxu0 0.0
    %250 = vmatprep.subr.mxu0 0.0
    %251 = vmatpush1.xpose.msra.mxu0 0.0
    %252 = vmatprep.subr.mxu0 0.0
    %253 = vmatpush1.xpose.msra.mxu0 0.0
    %254 = vmatprep.subr.mxu0 0.0
    %255 = vmatpush1.xpose.msra.mxu0 0.0
    %256 = vmatprep.subr.mxu0 0.0
    %257 = vmatpush1.xpose.msra.mxu0 0.0
    %258 = vmatprep.subr.mxu0 0.0
    %259 = vmatpush1.xpose.msra.mxu0 0.0
    %260 = vmatprep.subr.mxu0 0.0
    %261 = vmatpush1.xpose.msra.mxu0 0.0
    %262 = vmatprep.mubr.f32.mxu0 %v77
    %263 = vmatmul.mubr.f32.gmra.mrb[0].mxu0 %v69
    %v264 = vpop.f32.mrb[0].mxu0
    %v265 = vadd.f32 %v195, %v264
    %v266 = vpop.f32.mrb[0].mxu0
    %267 = vdwg.mxu0
    %268 = vmatprep.subr.mxu0 %v118
    %269 = vmatpush1.xpose.msra.mxu0 %v110
    %270 = vmatprep.subr.mxu0 0.0
    %271 = vmatpush1.xpose.msra.mxu0 0.0
    %272 = vmatprep.subr.mxu0 0.0
    %273 = vmatpush1.xpose.msra.mxu0 0.0
    %274 = vmatprep.subr.mxu0 0.0
    %275 = vmatpush1.xpose.msra.mxu0 0.0
    %276 = vmatprep.subr.mxu0 0.0
    %277 = vmatpush1.xpose.msra.mxu0 0.0
    %278 = vmatprep.subr.mxu0 0.0
    %279 = vmatpush1.xpose.msra.mxu0 0.0
    %280 = vmatprep.subr.mxu0 0.0
    %281 = vmatpush1.xpose.msra.mxu0 0.0
    %282 = vmatprep.subr.mxu0 0.0
    %283 = vmatpush1.xpose.msra.mxu0 0.0
    %284 = vmatprep.subr.mxu0 0.0
    %285 = vmatpush1.xpose.msra.mxu0 0.0
    %286 = vmatprep.subr.mxu0 0.0
    %287 = vmatpush1.xpose.msra.mxu0 0.0
    %288 = vmatprep.subr.mxu0 0.0
    %289 = vmatpush1.xpose.msra.mxu0 0.0
    %290 = vmatprep.subr.mxu0 0.0
    %291 = vmatpush1.xpose.msra.mxu0 0.0
    %292 = vmatprep.subr.mxu0 0.0
    %293 = vmatpush1.xpose.msra.mxu0 0.0
    %294 = vmatprep.subr.mxu0 0.0
    %295 = vmatpush1.xpose.msra.mxu0 0.0
    %296 = vmatprep.subr.mxu0 0.0
    %297 = vmatpush1.xpose.msra.mxu0 0.0
    %298 = vmatprep.subr.mxu0 0.0
    %299 = vmatpush1.xpose.msra.mxu0 0.0
    %300 = vmatprep.subr.mxu0 0.0
    %301 = vmatpush1.xpose.msra.mxu0 0.0
    %302 = vmatprep.subr.mxu0 0.0
    %303 = vmatpush1.xpose.msra.mxu0 0.0
    %304 = vmatprep.subr.mxu0 0.0
    %305 = vmatpush1.xpose.msra.mxu0 0.0
    %306 = vmatprep.subr.mxu0 0.0
    %307 = vmatpush1.xpose.msra.mxu0 0.0
    %308 = vmatprep.subr.mxu0 0.0
    %309 = vmatpush1.xpose.msra.mxu0 0.0
    %310 = vmatprep.subr.mxu0 0.0
    %311 = vmatpush1.xpose.msra.mxu0 0.0
    %312 = vmatprep.subr.mxu0 0.0
    %313 = vmatpush1.xpose.msra.mxu0 0.0
    %314 = vmatprep.subr.mxu0 0.0
    %315 = vmatpush1.xpose.msra.mxu0 0.0
    %316 = vmatprep.subr.mxu0 0.0
    %317 = vmatpush1.xpose.msra.mxu0 0.0
    %318 = vmatprep.subr.mxu0 0.0
    %319 = vmatpush1.xpose.msra.mxu0 0.0
    %320 = vmatprep.subr.mxu0 0.0
    %321 = vmatpush1.xpose.msra.mxu0 0.0
    %322 = vmatprep.subr.mxu0 0.0
    %323 = vmatpush1.xpose.msra.mxu0 0.0
    %324 = vmatprep.subr.mxu0 0.0
    %325 = vmatpush1.xpose.msra.mxu0 0.0
    %326 = vmatprep.subr.mxu0 0.0
    %327 = vmatpush1.xpose.msra.mxu0 0.0
    %328 = vmatprep.subr.mxu0 0.0
    %329 = vmatpush1.xpose.msra.mxu0 0.0
    %330 = vmatprep.subr.mxu0 0.0
    %331 = vmatpush1.xpose.msra.mxu0 0.0
    %332 = vmatprep.mubr.f32.mxu0 %v78
    %333 = vmatmul.mubr.f32.gmra.mrb[0].mxu0 %v70
    %v334 = vpop.f32.mrb[0].mxu0
    %v335 = vadd.f32 %v265, %v334
    %v336 = vpop.f32.mrb[0].mxu0
    %337 = vdwg.mxu0
    %338 = vmatprep.subr.mxu0 %v119
    %339 = vmatpush1.xpose.msra.mxu0 %v117
    %340 = vmatprep.subr.mxu0 0.0
    %341 = vmatpush1.xpose.msra.mxu0 0.0
    %342 = vmatprep.subr.mxu0 0.0
    %343 = vmatpush1.xpose.msra.mxu0 0.0
    %344 = vmatprep.subr.mxu0 0.0
    %345 = vmatpush1.xpose.msra.mxu0 0.0
    %346 = vmatprep.subr.mxu0 0.0
    %347 = vmatpush1.xpose.msra.mxu0 0.0
    %348 = vmatprep.subr.mxu0 0.0
    %349 = vmatpush1.xpose.msra.mxu0 0.0
    %350 = vmatprep.subr.mxu0 0.0
    %351 = vmatpush1.xpose.msra.mxu0 0.0
    %352 = vmatprep.subr.mxu0 0.0
    %353 = vmatpush1.xpose.msra.mxu0 0.0
    %354 = vmatprep.subr.mxu0 0.0
    %355 = vmatpush1.xpose.msra.mxu0 0.0
    %356 = vmatprep.subr.mxu0 0.0
    %357 = vmatpush1.xpose.msra.mxu0 0.0
    %358 = vmatprep.subr.mxu0 0.0
    %359 = vmatpush1.xpose.msra.mxu0 0.0
    %360 = vmatprep.subr.mxu0 0.0
    %361 = vmatpush1.xpose.msra.mxu0 0.0
    %362 = vmatprep.subr.mxu0 0.0
    %363 = vmatpush1.xpose.msra.mxu0 0.0
    %364 = vmatprep.subr.mxu0 0.0
    %365 = vmatpush1.xpose.msra.mxu0 0.0
    %366 = vmatprep.subr.mxu0 0.0
    %367 = vmatpush1.xpose.msra.mxu0 0.0
    %368 = vmatprep.subr.mxu0 0.0
    %369 = vmatpush1.xpose.msra.mxu0 0.0
    %370 = vmatprep.subr.mxu0 0.0
    %371 = vmatpush1.xpose.msra.mxu0 0.0
    %372 = vmatprep.subr.mxu0 0.0
    %373 = vmatpush1.xpose.msra.mxu0 0.0
    %374 = vmatprep.subr.mxu0 0.0
    %375 = vmatpush1.xpose.msra.mxu0 0.0
    %376 = vmatprep.subr.mxu0 0.0
    %377 = vmatpush1.xpose.msra.mxu0 0.0
    %378 = vmatprep.subr.mxu0 0.0
    %379 = vmatpush1.xpose.msra.mxu0 0.0
    %380 = vmatprep.subr.mxu0 0.0
    %381 = vmatpush1.xpose.msra.mxu0 0.0
    %382 = vmatprep.subr.mxu0 0.0
    %383 = vmatpush1.xpose.msra.mxu0 0.0
    %384 = vmatprep.subr.mxu0 0.0
    %385 = vmatpush1.xpose.msra.mxu0 0.0
    %386 = vmatprep.subr.mxu0 0.0
    %387 = vmatpush1.xpose.msra.mxu0 0.0
    %388 = vmatprep.subr.mxu0 0.0
    %389 = vmatpush1.xpose.msra.mxu0 0.0
    %390 = vmatprep.subr.mxu0 0.0
    %391 = vmatpush1.xpose.msra.mxu0 0.0
    %392 = vmatprep.subr.mxu0 0.0
    %393 = vmatpush1.xpose.msra.mxu0 0.0
    %394 = vmatprep.subr.mxu0 0.0
    %395 = vmatpush1.xpose.msra.mxu0 0.0
    %396 = vmatprep.subr.mxu0 0.0
    %397 = vmatpush1.xpose.msra.mxu0 0.0
    %398 = vmatprep.subr.mxu0 0.0
    %399 = vmatpush1.xpose.msra.mxu0 0.0
    %400 = vmatprep.subr.mxu0 0.0
    %401 = vmatpush1.xpose.msra.mxu0 0.0
    %402 = vmatprep.mubr.f32.mxu0 %v79
    %403 = vmatmul.mubr.f32.gmra.mrb[0].mxu0 %v71
    %v404 = vpop.f32.mrb[0].mxu0
    %v405 = vadd.f32 %v335, %v404
    %v406 = vpop.f32.mrb[0].mxu0
    %407 = vdwg.mxu0
    %v412 = vcombine.high %v62, %v62
    %v413 = vcombine.high %v63, %v63
    %v414 = vcombine.high %v64, %v64
    %v415 = vcombine.high %v65, %v65
    %v422 = vcombine.high %v66, %v66
    %v424 = vunpack.c.l.s4 1983009808
    %v425 = vunpack.c.0.s8 %v424
    %v426 = vlaneseq
    %v427 = vshrl.u32 %v426, 7
    %v428 = vsub.s32 %v425, %v427
    %v429 = vrot.slane %v66, %v428
    %v431 = vunpack.c.l.s4 1983009808
    %v432 = vunpack.c.0.s8 %v431
    %v433 = vlaneseq
    %v434 = vshrl.u32 %v433, 7
    %v435 = vsub.s32 %v432, %v434
    %v436 = vrot.slane %v422, %v435
    %v437 = vcombine.high %v429, %v429
    %v438 = vcombine.high %v436, %v436
    %v439 = vcombine.high %v67, %v67
    %v441 = vunpack.c.l.s4 1983009808
    %v442 = vunpack.c.0.s8 %v441
    %v443 = vlaneseq
    %v444 = vshrl.u32 %v443, 7
    %v445 = vsub.s32 %v442, %v444
    %v446 = vrot.slane %v67, %v445
    %v448 = vunpack.c.l.s4 1983009808
    %v449 = vunpack.c.0.s8 %v448
    %v450 = vlaneseq
    %v451 = vshrl.u32 %v450, 7
    %v452 = vsub.s32 %v449, %v451
    %v453 = vrot.slane %v439, %v452
    %v454 = vcombine.high %v446, %v446
    %v455 = vcombine.high %v453, %v453
    %464 = vmatprep.subr.mxu0 %v437
    %465 = vmatpush1.xpose.msra.mxu0 %v429
    %466 = vmatprep.subr.mxu0 0.0
    %467 = vmatpush1.xpose.msra.mxu0 0.0
    %468 = vmatprep.subr.mxu0 0.0
    %469 = vmatpush1.xpose.msra.mxu0 0.0
    %470 = vmatprep.subr.mxu0 0.0
    %471 = vmatpush1.xpose.msra.mxu0 0.0
    %472 = vmatprep.subr.mxu0 0.0
    %473 = vmatpush1.xpose.msra.mxu0 0.0
    %474 = vmatprep.subr.mxu0 0.0
    %475 = vmatpush1.xpose.msra.mxu0 0.0
    %476 = vmatprep.subr.mxu0 0.0
    %477 = vmatpush1.xpose.msra.mxu0 0.0
    %478 = vmatprep.subr.mxu0 0.0
    %479 = vmatpush1.xpose.msra.mxu0 0.0
    %480 = vmatprep.subr.mxu0 0.0
    %481 = vmatpush1.xpose.msra.mxu0 0.0
    %482 = vmatprep.subr.mxu0 0.0
    %483 = vmatpush1.xpose.msra.mxu0 0.0
    %484 = vmatprep.subr.mxu0 0.0
    %485 = vmatpush1.xpose.msra.mxu0 0.0
    %486 = vmatprep.subr.mxu0 0.0
    %487 = vmatpush1.xpose.msra.mxu0 0.0
    %488 = vmatprep.subr.mxu0 0.0
    %489 = vmatpush1.xpose.msra.mxu0 0.0
    %490 = vmatprep.subr.mxu0 0.0
    %491 = vmatpush1.xpose.msra.mxu0 0.0
    %492 = vmatprep.subr.mxu0 0.0
    %493 = vmatpush1.xpose.msra.mxu0 0.0
    %494 = vmatprep.subr.mxu0 0.0
    %495 = vmatpush1.xpose.msra.mxu0 0.0
    %496 = vmatprep.subr.mxu0 0.0
    %497 = vmatpush1.xpose.msra.mxu0 0.0
    %498 = vmatprep.subr.mxu0 0.0
    %499 = vmatpush1.xpose.msra.mxu0 0.0
    %500 = vmatprep.subr.mxu0 0.0
    %501 = vmatpush1.xpose.msra.mxu0 0.0
    %502 = vmatprep.subr.mxu0 0.0
    %503 = vmatpush1.xpose.msra.mxu0 0.0
    %504 = vmatprep.subr.mxu0 0.0
    %505 = vmatpush1.xpose.msra.mxu0 0.0
    %506 = vmatprep.subr.mxu0 0.0
    %507 = vmatpush1.xpose.msra.mxu0 0.0
    %508 = vmatprep.subr.mxu0 0.0
    %509 = vmatpush1.xpose.msra.mxu0 0.0
    %510 = vmatprep.subr.mxu0 0.0
    %511 = vmatpush1.xpose.msra.mxu0 0.0
    %512 = vmatprep.subr.mxu0 0.0
    %513 = vmatpush1.xpose.msra.mxu0 0.0
    %514 = vmatprep.subr.mxu0 0.0
    %515 = vmatpush1.xpose.msra.mxu0 0.0
    %516 = vmatprep.subr.mxu0 0.0
    %517 = vmatpush1.xpose.msra.mxu0 0.0
    %518 = vmatprep.subr.mxu0 0.0
    %519 = vmatpush1.xpose.msra.mxu0 0.0
    %520 = vmatprep.subr.mxu0 0.0
    %521 = vmatpush1.xpose.msra.mxu0 0.0
    %522 = vmatprep.subr.mxu0 0.0
    %523 = vmatpush1.xpose.msra.mxu0 0.0
    %524 = vmatprep.subr.mxu0 0.0
    %525 = vmatpush1.xpose.msra.mxu0 0.0
    %526 = vmatprep.subr.mxu0 0.0
    %527 = vmatpush1.xpose.msra.mxu0 0.0
    %528 = vmatprep.mubr.f32.mxu0 %v412
    %529 = vmatmul.mubr.f32.gmra.mrb[0].mxu0 %v62
    %v530 = vpop.f32.mrb[0].mxu0
    %v531 = vadd.f32 %v405, %v530
    %v532 = vpop.f32.mrb[0].mxu0
    %533 = vdwg.mxu0
    %534 = vmatprep.subr.mxu0 %v438
    %535 = vmatpush1.xpose.msra.mxu0 %v436
    %536 = vmatprep.subr.mxu0 0.0
    %537 = vmatpush1.xpose.msra.mxu0 0.0
    %538 = vmatprep.subr.mxu0 0.0
    %539 = vmatpush1.xpose.msra.mxu0 0.0
    %540 = vmatprep.subr.mxu0 0.0
    %541 = vmatpush1.xpose.msra.mxu0 0.0
    %542 = vmatprep.subr.mxu0 0.0
    %543 = vmatpush1.xpose.msra.mxu0 0.0
    %544 = vmatprep.subr.mxu0 0.0
    %545 = vmatpush1.xpose.msra.mxu0 0.0
    %546 = vmatprep.subr.mxu0 0.0
    %547 = vmatpush1.xpose.msra.mxu0 0.0
    %548 = vmatprep.subr.mxu0 0.0
    %549 = vmatpush1.xpose.msra.mxu0 0.0
    %550 = vmatprep.subr.mxu0 0.0
    %551 = vmatpush1.xpose.msra.mxu0 0.0
    %552 = vmatprep.subr.mxu0 0.0
    %553 = vmatpush1.xpose.msra.mxu0 0.0
    %554 = vmatprep.subr.mxu0 0.0
    %555 = vmatpush1.xpose.msra.mxu0 0.0
    %556 = vmatprep.subr.mxu0 0.0
    %557 = vmatpush1.xpose.msra.mxu0 0.0
    %558 = vmatprep.subr.mxu0 0.0
    %559 = vmatpush1.xpose.msra.mxu0 0.0
    %560 = vmatprep.subr.mxu0 0.0
    %561 = vmatpush1.xpose.msra.mxu0 0.0
    %562 = vmatprep.subr.mxu0 0.0
    %563 = vmatpush1.xpose.msra.mxu0 0.0
    %564 = vmatprep.subr.mxu0 0.0
    %565 = vmatpush1.xpose.msra.mxu0 0.0
    %566 = vmatprep.subr.mxu0 0.0
    %567 = vmatpush1.xpose.msra.mxu0 0.0
    %568 = vmatprep.subr.mxu0 0.0
    %569 = vmatpush1.xpose.msra.mxu0 0.0
    %570 = vmatprep.subr.mxu0 0.0
    %571 = vmatpush1.xpose.msra.mxu0 0.0
    %572 = vmatprep.subr.mxu0 0.0
    %573 = vmatpush1.xpose.msra.mxu0 0.0
    %574 = vmatprep.subr.mxu0 0.0
    %575 = vmatpush1.xpose.msra.mxu0 0.0
    %576 = vmatprep.subr.mxu0 0.0
    %577 = vmatpush1.xpose.msra.mxu0 0.0
    %578 = vmatprep.subr.mxu0 0.0
    %579 = vmatpush1.xpose.msra.mxu0 0.0
    %580 = vmatprep.subr.mxu0 0.0
    %581 = vmatpush1.xpose.msra.mxu0 0.0
    %582 = vmatprep.subr.mxu0 0.0
    %583 = vmatpush1.xpose.msra.mxu0 0.0
    %584 = vmatprep.subr.mxu0 0.0
    %585 = vmatpush1.xpose.msra.mxu0 0.0
    %586 = vmatprep.subr.mxu0 0.0
    %587 = vmatpush1.xpose.msra.mxu0 0.0
    %588 = vmatprep.subr.mxu0 0.0
    %589 = vmatpush1.xpose.msra.mxu0 0.0
    %590 = vmatprep.subr.mxu0 0.0
    %591 = vmatpush1.xpose.msra.mxu0 0.0
    %592 = vmatprep.subr.mxu0 0.0
    %593 = vmatpush1.xpose.msra.mxu0 0.0
    %594 = vmatprep.subr.mxu0 0.0
    %595 = vmatpush1.xpose.msra.mxu0 0.0
    %596 = vmatprep.subr.mxu0 0.0
    %597 = vmatpush1.xpose.msra.mxu0 0.0
    %598 = vmatprep.mubr.f32.mxu0 %v413
    %599 = vmatmul.mubr.f32.gmra.mrb[0].mxu0 %v63
    %v600 = vpop.f32.mrb[0].mxu0
    %v601 = vadd.f32 %v531, %v600
    %v602 = vpop.f32.mrb[0].mxu0
    %603 = vdwg.mxu0
    %604 = vmatprep.subr.mxu0 %v454
    %605 = vmatpush1.xpose.msra.mxu0 %v446
    %606 = vmatprep.subr.mxu0 0.0
    %607 = vmatpush1.xpose.msra.mxu0 0.0
    %608 = vmatprep.subr.mxu0 0.0
    %609 = vmatpush1.xpose.msra.mxu0 0.0
    %610 = vmatprep.subr.mxu0 0.0
    %611 = vmatpush1.xpose.msra.mxu0 0.0
    %612 = vmatprep.subr.mxu0 0.0
    %613 = vmatpush1.xpose.msra.mxu0 0.0
    %614 = vmatprep.subr.mxu0 0.0
    %615 = vmatpush1.xpose.msra.mxu0 0.0
    %616 = vmatprep.subr.mxu0 0.0
    %617 = vmatpush1.xpose.msra.mxu0 0.0
    %618 = vmatprep.subr.mxu0 0.0
    %619 = vmatpush1.xpose.msra.mxu0 0.0
    %620 = vmatprep.subr.mxu0 0.0
    %621 = vmatpush1.xpose.msra.mxu0 0.0
    %622 = vmatprep.subr.mxu0 0.0
    %623 = vmatpush1.xpose.msra.mxu0 0.0
    %624 = vmatprep.subr.mxu0 0.0
    %625 = vmatpush1.xpose.msra.mxu0 0.0
    %626 = vmatprep.subr.mxu0 0.0
    %627 = vmatpush1.xpose.msra.mxu0 0.0
    %628 = vmatprep.subr.mxu0 0.0
    %629 = vmatpush1.xpose.msra.mxu0 0.0
    %630 = vmatprep.subr.mxu0 0.0
    %631 = vmatpush1.xpose.msra.mxu0 0.0
    %632 = vmatprep.subr.mxu0 0.0
    %633 = vmatpush1.xpose.msra.mxu0 0.0
    %634 = vmatprep.subr.mxu0 0.0
    %635 = vmatpush1.xpose.msra.mxu0 0.0
    %636 = vmatprep.subr.mxu0 0.0
    %637 = vmatpush1.xpose.msra.mxu0 0.0
    %638 = vmatprep.subr.mxu0 0.0
    %639 = vmatpush1.xpose.msra.mxu0 0.0
    %640 = vmatprep.subr.mxu0 0.0
    %641 = vmatpush1.xpose.msra.mxu0 0.0
    %642 = vmatprep.subr.mxu0 0.0
    %643 = vmatpush1.xpose.msra.mxu0 0.0
    %644 = vmatprep.subr.mxu0 0.0
    %645 = vmatpush1.xpose.msra.mxu0 0.0
    %646 = vmatprep.subr.mxu0 0.0
    %647 = vmatpush1.xpose.msra.mxu0 0.0
    %648 = vmatprep.subr.mxu0 0.0
    %649 = vmatpush1.xpose.msra.mxu0 0.0
    %650 = vmatprep.subr.mxu0 0.0
    %651 = vmatpush1.xpose.msra.mxu0 0.0
    %652 = vmatprep.subr.mxu0 0.0
    %653 = vmatpush1.xpose.msra.mxu0 0.0
    %654 = vmatprep.subr.mxu0 0.0
    %655 = vmatpush1.xpose.msra.mxu0 0.0
    %656 = vmatprep.subr.mxu0 0.0
    %657 = vmatpush1.xpose.msra.mxu0 0.0
    %658 = vmatprep.subr.mxu0 0.0
    %659 = vmatpush1.xpose.msra.mxu0 0.0
    %660 = vmatprep.subr.mxu0 0.0
    %661 = vmatpush1.xpose.msra.mxu0 0.0
    %662 = vmatprep.subr.mxu0 0.0
    %663 = vmatpush1.xpose.msra.mxu0 0.0
    %664 = vmatprep.subr.mxu0 0.0
    %665 = vmatpush1.xpose.msra.mxu0 0.0
    %666 = vmatprep.subr.mxu0 0.0
    %667 = vmatpush1.xpose.msra.mxu0 0.0
    %668 = vmatprep.mubr.f32.mxu0 %v414
    %669 = vmatmul.mubr.f32.gmra.mrb[0].mxu0 %v64
    %v670 = vpop.f32.mrb[0].mxu0
    %v671 = vadd.f32 %v601, %v670
    %v672 = vpop.f32.mrb[0].mxu0
    %673 = vdwg.mxu0
    %674 = vmatprep.subr.mxu0 %v455
    %675 = vmatpush1.xpose.msra.mxu0 %v453
    %676 = vmatprep.subr.mxu0 0.0
    %677 = vmatpush1.xpose.msra.mxu0 0.0
    %678 = vmatprep.subr.mxu0 0.0
    %679 = vmatpush1.xpose.msra.mxu0 0.0
    %680 = vmatprep.subr.mxu0 0.0
    %681 = vmatpush1.xpose.msra.mxu0 0.0
    %682 = vmatprep.subr.mxu0 0.0
    %683 = vmatpush1.xpose.msra.mxu0 0.0
    %684 = vmatprep.subr.mxu0 0.0
    %685 = vmatpush1.xpose.msra.mxu0 0.0
    %686 = vmatprep.subr.mxu0 0.0
    %687 = vmatpush1.xpose.msra.mxu0 0.0
    %688 = vmatprep.subr.mxu0 0.0
    %689 = vmatpush1.xpose.msra.mxu0 0.0
    %690 = vmatprep.subr.mxu0 0.0
    %691 = vmatpush1.xpose.msra.mxu0 0.0
    %692 = vmatprep.subr.mxu0 0.0
    %693 = vmatpush1.xpose.msra.mxu0 0.0
    %694 = vmatprep.subr.mxu0 0.0
    %695 = vmatpush1.xpose.msra.mxu0 0.0
    %696 = vmatprep.subr.mxu0 0.0
    %697 = vmatpush1.xpose.msra.mxu0 0.0
    %698 = vmatprep.subr.mxu0 0.0
    %699 = vmatpush1.xpose.msra.mxu0 0.0
    %700 = vmatprep.subr.mxu0 0.0
    %701 = vmatpush1.xpose.msra.mxu0 0.0
    %702 = vmatprep.subr.mxu0 0.0
    %703 = vmatpush1.xpose.msra.mxu0 0.0
    %704 = vmatprep.subr.mxu0 0.0
    %705 = vmatpush1.xpose.msra.mxu0 0.0
    %706 = vmatprep.subr.mxu0 0.0
    %707 = vmatpush1.xpose.msra.mxu0 0.0
    %708 = vmatprep.subr.mxu0 0.0
    %709 = vmatpush1.xpose.msra.mxu0 0.0
    %710 = vmatprep.subr.mxu0 0.0
    %711 = vmatpush1.xpose.msra.mxu0 0.0
    %712 = vmatprep.subr.mxu0 0.0
    %713 = vmatpush1.xpose.msra.mxu0 0.0
    %714 = vmatprep.subr.mxu0 0.0
    %715 = vmatpush1.xpose.msra.mxu0 0.0
    %716 = vmatprep.subr.mxu0 0.0
    %717 = vmatpush1.xpose.msra.mxu0 0.0
    %718 = vmatprep.subr.mxu0 0.0
    %719 = vmatpush1.xpose.msra.mxu0 0.0
    %720 = vmatprep.subr.mxu0 0.0
    %721 = vmatpush1.xpose.msra.mxu0 0.0
    %722 = vmatprep.subr.mxu0 0.0
    %723 = vmatpush1.xpose.msra.mxu0 0.0
    %724 = vmatprep.subr.mxu0 0.0
    %725 = vmatpush1.xpose.msra.mxu0 0.0
    %726 = vmatprep.subr.mxu0 0.0
    %727 = vmatpush1.xpose.msra.mxu0 0.0
    %728 = vmatprep.subr.mxu0 0.0
    %729 = vmatpush1.xpose.msra.mxu0 0.0
    %730 = vmatprep.subr.mxu0 0.0
    %731 = vmatpush1.xpose.msra.mxu0 0.0
    %732 = vmatprep.subr.mxu0 0.0
    %733 = vmatpush1.xpose.msra.mxu0 0.0
    %734 = vmatprep.subr.mxu0 0.0
    %735 = vmatpush1.xpose.msra.mxu0 0.0
    %736 = vmatprep.subr.mxu0 0.0
    %737 = vmatpush1.xpose.msra.mxu0 0.0
    %738 = vmatprep.mubr.f32.mxu0 %v415
    %739 = vmatmul.mubr.f32.gmra.mrb[0].mxu0 %v65
    %v740 = vpop.f32.mrb[0].mxu0
    %v741 = vadd.f32 %v671, %v740
    %v742 = vpop.f32.mrb[0].mxu0
    %743 = vdwg.mxu0
    %v744 = vadd.f32 %v61, %v741
    %vm745 = vcmask 11264
    %746 = vst.msk [vmem:[#allocation2] sm:$0xf] %vm745, %v744
    // Predicated region
    $region34: #{tpu_custom_call.1} parent=1 // pred_check
      %p747 = pneg %p53
    $region35: #{tpu_custom_call.1} parent=1 // pred_check_branch
      %749 = sbr.rel (%p747) target = $region37
    $region36: #{tpu_custom_call.1} parent=1 // pred_region
      %v750 = vld [vmem:[#allocation2] sm:$0xf]
      %v751 = vld [vmem:[%s3] sm:$0xf]
      %753 = vset.pattern.permute.xlu0 0
      %754 = vperm.xlu0 %753, %v751
      %v755 = vpop.permute.xlu0 %754
      %v757 = vsub.f32 %v750, %v755
      %v758 = vsel %vm745, %v757, -inf
      %v759 = vrot.slane %v758, 4
      %v760 = vmax.f32 %v758, %v759
      %v761 = vrot.slane %v760, 2
      %v762 = vmax.f32 %v760, %v761
      %v763 = vrot.slane %v762, 1
      %v764 = vmax.f32 %v762, %v763
      %v765 = vsub.f32 %v757, %v764
      %v766 = vmul.f32 %v765, 1.442695
      %v767 = vpow.pop %v766
      %v768 = vsel %vm745, %v767, 0.0
      %v769 = vrot.slane %v768, 4
      %v770 = vadd.f32 %v768, %v769
      %v771 = vrot.slane %v770, 2
      %v772 = vadd.f32 %v770, %v771
      %v773 = vrot.slane %v772, 1
      %v774 = vadd.f32 %v772, %v773
      %v775 = vlog2.pop %v774
      %v776 = vmul.f32 %v775, 0.6931472
      %v777 = vadd.f32 %v764, %v776
      %v778 = vsub.f32 %v777, 1.3862944
      %vm779 = vcmask 8192
      %780 = vst.msk [vmem:[#allocation9] sm:$0x1] %vm779, %v778
    $region37: #{tpu_custom_call.1} parent=1 // pred_fallthru
      _
    // Predicated region
    $region38: #{tpu_custom_call.1} parent=1 // pred_check
      _
    $region39: #{tpu_custom_call.1} parent=1 // pred_check_branch
      %782 = sbr.rel (0) target = $region41
    $region40: #{tpu_custom_call.1} parent=1 // pred_region
      %s784 = ssub.s32 16, 16
      %785 = vsyncadd [#allocation5], %s784
      %s787 = sshll.u32 [#allocation9], 4
      %s788 = int_to_ptr.vmem [resolvable:$true] %s787
      %790 = dma.vmem_to_hbm [thread:$0]  %s788, 16, %s4, [#allocation5]
    $region41: #{tpu_custom_call.1} parent=1 // pred_fallthru
      _
    // Predicated region
    $region42: #{tpu_custom_call.1} parent=1 // pred_check
      _
    $region43: #{tpu_custom_call.1} parent=1 // pred_check_branch
      %792 = sbr.rel (0) target = $region45
    $region44: #{tpu_custom_call.1} parent=1 // pred_region
      %793 = dma.done [#allocation5], 16
    $region45: #{tpu_custom_call.1} parent=1 // pred_fallthru
      _
    %794 = vsyncpa [#allocation4], 1
    %795 = vsyncpa [#allocation7], 1
    %796 = vsyncpa [#allocation5], 1

</llo_original>
